<compile_context>
chip_gen: v5e
topology: v5e:2x2
jax: 0.10.0
libtpu: 0.0.40
codegen_flags: <defaults>
</compile_context>

<pallas_src>
import functools

import jax
import jax.numpy as jnp
from jax import lax
from jax.experimental import pallas as pl
from jax.experimental.pallas import tpu as pltpu


# ----------------------------- Pallas kernel ------------------------------ #
def maxout_kernel(feat_ref, w_ref, b_ref, out_ref, *, n_layer, emb, normalize):
    # Single (B, D) @ (D, L*E) MXU matmul: bf16 operands, f32 accumulation.
    # feat is tiny (B*D*4 bytes); the in-kernel f32->bf16 cast is a free VPU op
    # on a DMA-bound kernel and keeps the MXU on its single-pass bf16 path.
    f = feat_ref[...].astype(jnp.bfloat16)
    y = jnp.dot(f, w_ref[...], preferred_element_type=jnp.float32) + b_ref[...]

    # Max over the L fused linears.  E == 128, so every static slice starts on
    # a lane-tile boundary -> free views, no relayout.
    e = y[:, :emb]
    for l in range(1, n_layer):
        e = jnp.maximum(e, y[:, l * emb:(l + 1) * emb])

    if normalize:
        # F.normalize(p=2, dim=1): x / max(||x||_2, 1e-12).  Implemented as
        # x * rsqrt(max(sumsq, 1e-24)) so the transcendental runs on the EUP.
        sumsq = jnp.sum(e * e, axis=1, keepdims=True)
        e = e * lax.rsqrt(jnp.maximum(sumsq, 1e-24))

    out_ref[...] = e.astype(out_ref.dtype)


# ------------------- init-time parameter fusion (hoisted) ------------------ #
def fuse_maxout_params(w_stack, b_stack, weight_dtype=jnp.bfloat16):
    """Fuse L linears once at init: (L, D, E) -> (D, L*E) bf16, (L, E) -> (1, L*E) f32.

    Done once when the module is built, NOT per forward call.
    """
    L, D, E = w_stack.shape
    w_flat = jnp.transpose(w_stack, (1, 0, 2)).reshape(D, L * E).astype(weight_dtype)
    b_flat = b_stack.reshape(1, L * E).astype(jnp.float32)
    return w_flat, b_flat


def maxout_embed(feat, w_flat, b_flat, *, n_layer, normalize=True):
    """feat: (B, D) f32, w_flat: (D, L*E) bf16 (pre-fused), b_flat: (1, L*E) f32."""
    B, D = feat.shape
    D2, LE = w_flat.shape
    assert D == D2 and LE % n_layer == 0 and b_flat.shape == (1, LE)
    E = LE // n_layer

    kernel = functools.partial(
        maxout_kernel, n_layer=n_layer, emb=E, normalize=normalize)

    flops = 2 * B * D * LE
    bytes_accessed = (4 * B * D            # features (f32)
                      + 2 * D * LE         # fused weights (bf16)
                      + 4 * LE             # fused bias (f32)
                      + 4 * B * E)         # output (f32)

    return pl.pallas_call(
        kernel,
        out_shape=jax.ShapeDtypeStruct((B, E), feat.dtype),
        grid_spec=pltpu.PrefetchScalarGridSpec(
            num_scalar_prefetch=0,
            grid=(1,),  # single invocation: everything fits VMEM on all gens
            in_specs=[
                pl.BlockSpec((B, D), lambda i: (0, 0)),      # features
                pl.BlockSpec((D, LE), lambda i: (0, 0)),     # fused weights (bf16)
                pl.BlockSpec((1, LE), lambda i: (0, 0)),     # fused bias (f32)
            ],
            out_specs=pl.BlockSpec((B, E), lambda i: (0, 0)),
        ),
        compiler_params=pltpu.CompilerParams(
            dimension_semantics=("arbitrary",)),
        cost_estimate=pl.CostEstimate(
            flops=flops,
            transcendentals=B if normalize else 0,
            bytes_accessed=bytes_accessed),
    )(feat, w_flat, b_flat)


# ------------------------- base network (plain JAX glue) ------------------ #
def base_forward(x, conv_w, conv_b):
    """Stand-in `base`: Conv2d(4, 8, k=3, s=2, p=1) on NCHW input.

    (2, 4, 16, 16) -> (2, 8, 8, 8); flattened per-sample size = 8*8*8 = 512,
    matching output_size=512 of MaxOutEmbedding.
    """
    # TODO(synk): `base` is an arbitrary external nn.Module in the spec; a
    # simple conv stands in for it here (it is not part of the Pallas kernel).
    y = lax.conv_general_dilated(
        x, conv_w,
        window_strides=(2, 2),
        padding=((1, 1), (1, 1)),
        dimension_numbers=("NCHW", "OIHW", "NCHW"))
    y = y + conv_b[None, :, None, None]
    return y


# --------------------------------- driver --------------------------------- #
def main():
    key = jax.random.PRNGKey(0)
    k_x, k_cw, k_cb, k_w, k_b = jax.random.split(key, 5)

    B, C, H, W = 2, 4, 16, 16
    n_layer, output_size, embedding_size = 5, 512, 128

    x = jax.random.normal(k_x, (B, C, H, W), dtype=jnp.float32)

    # base (Conv2d 4->8, k=3, s=2, p=1) params, deterministic.
    conv_w = jax.random.normal(k_cw, (8, C, 3, 3), dtype=jnp.float32) * 0.1
    conv_b = jax.random.normal(k_cb, (8,), dtype=jnp.float32) * 0.1

    # MaxOut linear params: torch Linear weight is (E, D); stored as (L, D, E).
    w_stack = jax.random.normal(
        k_w, (n_layer, output_size, embedding_size), dtype=jnp.float32) * 0.05
    b_stack = jax.random.normal(
        k_b, (n_layer, embedding_size), dtype=jnp.float32) * 0.05

    # ---- init-time (one-off) fusion: NOT in the per-call path ----
    w_flat, b_flat = fuse_maxout_params(w_stack, b_stack)
    w_flat, b_flat = jax.block_until_ready((w_flat, b_flat))

    # base(input).view(B, -1)  -- NCHW flatten matches torch .view semantics.
    feat = base_forward(x, conv_w, conv_b).reshape(B, -1)
    assert feat.shape == (B, output_size)

    embed = maxout_embed(feat, w_flat, b_flat, n_layer=n_layer, normalize=True)
    embed = jax.block_until_ready(embed)
    assert embed.shape == (B, embedding_size)

    # Pure-JAX reference of the maxout + L2-normalize hot path, using the same
    # bf16 weight/activation precision policy as the kernel (the module's
    # params are stored bf16):
    #   torch.stack([l(feat)]).max(0)[0]; F.normalize(p=2, dim=1)
    w_ref = w_stack.astype(jnp.bfloat16)
    y_ref = jnp.einsum("bd,lde->lbe", feat.astype(jnp.bfloat16), w_ref,
                       preferred_element_type=jnp.float32)
    ref = jnp.max(y_ref + b_stack[:, None, :], axis=0)
    ref = ref / jnp.maximum(
        jnp.sqrt(jnp.sum(ref * ref, axis=1, keepdims=True)), 1e-12)
    # Tolerance covers accumulation-order differences between the Mosaic MXU
    # matmul and the XLA einsum (both bf16 operands, f32 accumulation).
    assert jnp.allclose(embed, ref, atol=1e-4, rtol=1e-4)

    print("KERNEL_OK")


if __name__ == "__main__":
    main()
</pallas_src>

<mosaic_0001>
module attributes {stable_mosaic.version = 11 : i64} {
  func.func @maxout_kernel(%arg0: i32, %arg1: memref<2x512xf32, #tpu.memory_space<vmem>>, %arg2: memref<512x640xbf16, #tpu.memory_space<vmem>>, %arg3: memref<1x640xf32, #tpu.memory_space<vmem>>, %arg4: memref<2x128xf32, #tpu.memory_space<vmem>>) attributes {dimension_semantics = [#tpu.dimension_semantics<arbitrary>], iteration_bounds = array<i64: 1>, scalar_prefetch = 0 : i64, scratch_operands = 0 : i64, tpu.core_type = #tpu.core_type<tc>, window_params = [{pipeline_mode = #tpu.pipeline_mode<synchronous>, transform_indices = @transform_0, window_bounds = array<i64: 2, 512>}, {pipeline_mode = #tpu.pipeline_mode<synchronous>, transform_indices = @transform_1, window_bounds = array<i64: 512, 640>}, {pipeline_mode = #tpu.pipeline_mode<synchronous>, transform_indices = @transform_2, window_bounds = array<i64: 1, 640>}, {pipeline_mode = #tpu.pipeline_mode<synchronous>, transform_indices = @transform_3, window_bounds = array<i64: 2, 128>}]} {
    %c0 = arith.constant 0 : index
    %c0_0 = arith.constant 0 : index
    %0 = vector.load %arg1[%c0, %c0_0] : memref<2x512xf32, #tpu.memory_space<vmem>>, vector<2x512xf32>
    %1 = arith.truncf %0 : vector<2x512xf32> to vector<2x512xbf16>
    %c0_1 = arith.constant 0 : index
    %c0_2 = arith.constant 0 : index
    %2 = vector.load %arg2[%c0_1, %c0_2] : memref<512x640xbf16, #tpu.memory_space<vmem>>, vector<512x640xbf16>
    %cst = arith.constant dense<0.000000e+00> : vector<2x640xf32>
    %3 = tpu.matmul %1, %2, %cst {dimension_numbers = #tpu.dot_dimension_numbers<[1], [0], [0], [1], [0, 0, 1, 1], [], []>} : vector<2x512xbf16>, vector<512x640xbf16>, vector<2x640xf32> -> vector<2x640xf32>
    %c0_3 = arith.constant 0 : index
    %c0_4 = arith.constant 0 : index
    %4 = vector.load %arg3[%c0_3, %c0_4] : memref<1x640xf32, #tpu.memory_space<vmem>>, vector<1x640xf32>
    %5 = vector.broadcast %4 : vector<1x640xf32> to vector<2x640xf32>
    %6 = arith.addf %3, %5 : vector<2x640xf32>
    %7 = vector.extract_strided_slice %6 {offsets = [0, 0], sizes = [2, 128], strides = [1, 1]} : vector<2x640xf32> to vector<2x128xf32>
    %8 = vector.extract_strided_slice %6 {offsets = [0, 128], sizes = [2, 128], strides = [1, 1]} : vector<2x640xf32> to vector<2x128xf32>
    %9 = arith.maximumf %7, %8 : vector<2x128xf32>
    %10 = vector.extract_strided_slice %6 {offsets = [0, 256], sizes = [2, 128], strides = [1, 1]} : vector<2x640xf32> to vector<2x128xf32>
    %11 = arith.maximumf %9, %10 : vector<2x128xf32>
    %12 = vector.extract_strided_slice %6 {offsets = [0, 384], sizes = [2, 128], strides = [1, 1]} : vector<2x640xf32> to vector<2x128xf32>
    %13 = arith.maximumf %11, %12 : vector<2x128xf32>
    %14 = vector.extract_strided_slice %6 {offsets = [0, 512], sizes = [2, 128], strides = [1, 1]} : vector<2x640xf32> to vector<2x128xf32>
    %15 = arith.maximumf %13, %14 : vector<2x128xf32>
    %16 = arith.mulf %15, %15 : vector<2x128xf32>
    %cst_5 = arith.constant dense<0.000000e+00> : vector<2xf32>
    %17 = vector.multi_reduction <add>, %16, %cst_5 [1] : vector<2x128xf32> to vector<2xf32>
    %18 = vector.shape_cast %17 : vector<2xf32> to vector<2x1xf32>
    %cst_6 = arith.constant 1.000000e-24 : f32
    %19 = vector.broadcast %cst_6 : f32 to vector<2x1xf32>
    %20 = arith.maximumf %18, %19 : vector<2x1xf32>
    %21 = math.rsqrt %20 : vector<2x1xf32>
    %22 = vector.broadcast %21 : vector<2x1xf32> to vector<2x128xf32>
    %23 = arith.mulf %15, %22 : vector<2x128xf32>
    %c0_7 = arith.constant 0 : index
    %c0_8 = arith.constant 0 : index
    %24 = vector.load %arg4[%c0_7, %c0_8] : memref<2x128xf32, #tpu.memory_space<vmem>>, vector<2x128xf32>
    tpu.vector_store %arg4[%c0_7, %c0_8], %23 {strides = array<i32>} : memref<2x128xf32, #tpu.memory_space<vmem>>, vector<2x128xf32>,
    return
  }
  func.func @transform_0(%arg0: i32) -> (i32, i32) {
    %c0_i32 = arith.constant 0 : i32
    %c0_i32_0 = arith.constant 0 : i32
    %c0_i32_1 = arith.constant 0 : i32
    return %c0_i32, %c0_i32_0 : i32, i32
  }
  func.func @transform_1(%arg0: i32) -> (i32, i32) {
    %c0_i32 = arith.constant 0 : i32
    %c0_i32_0 = arith.constant 0 : i32
    %c0_i32_1 = arith.constant 0 : i32
    return %c0_i32, %c0_i32_0 : i32, i32
  }
  func.func @transform_2(%arg0: i32) -> (i32, i32) {
    %c0_i32 = arith.constant 0 : i32
    %c0_i32_0 = arith.constant 0 : i32
    %c0_i32_1 = arith.constant 0 : i32
    return %c0_i32, %c0_i32_0 : i32, i32
  }
  func.func @transform_3(%arg0: i32) -> (i32, i32) {
    %c0_i32 = arith.constant 0 : i32
    %c0_i32_0 = arith.constant 0 : i32
    %c0_i32_1 = arith.constant 0 : i32
    return %c0_i32, %c0_i32_0 : i32, i32
  }
}

</mosaic_0001>

<llo_original>
// kernel: tpu_custom_call.1
$region0: #{tpu_custom_call.1}
  #allocation0 [shape = 'u32[]', space=smem, size = 0x4, offset = 0x4, fixed_abs, tag = 'smem constant byte address 0x4 - core index']
  #allocation1 [shape = 'u32[72,128]{1,0:T(1,128)}', space=vmem, size = 0x9000, scoped, tag = 'internal scratch']
  %s0 = inlined_call_operand.hbm [shape: f32[2,512], index: 0, kind: input, shape index: {}]
  %s1 = inlined_call_operand.hbm [shape: bf16[512,640], index: 1, kind: input, shape index: {}]
  %s2 = inlined_call_operand.hbm [shape: f32[1,640], index: 2, kind: input, shape index: {}]
  %s3 = inlined_call_operand.hbm [shape: f32[2,128], index: 3, kind: output, shape index: {}]
  %s4 = sld [smem:[#allocation0]]
  $region34: #{tpu_custom_call.1} parent=0
    _
  %s6 = ssub.s32 1, %s4
  %s7 = scalar_select 0, %s6, %s4
  $region1: #{tpu_custom_call.1} parent=0
    #allocation2 [shape = 'u8[4096]{0}', space=vmem, size = 0x1000, scoped, tag = 'input window, operand 0, single buffered']
    #allocation3 [shape = 's32[1]{0}', space=sflag, size = 0x4, scoped, tag = 'scoped memory for tpu_custom_call.1']
    #allocation4 [shape = 's32[1]{0}', space=sflag, size = 0x4, scoped, tag = 'scoped memory for tpu_custom_call.1']
    #allocation5 [shape = 'u8[655360]{0}', space=vmem, size = 0xa0000, scoped, tag = 'input window, operand 1, single buffered']
    #allocation6 [shape = 's32[1]{0}', space=sflag, size = 0x4, scoped, tag = 'scoped memory for tpu_custom_call.1']
    #allocation7 [shape = 'u8[2560]{0}', space=vmem, size = 0xc00, scoped, tag = 'input window, operand 2, single buffered']
    #allocation8 [shape = 'u8[1024]{0}', space=vmem, size = 0x400, scoped, tag = 'output window, operand 0, single buffered']
    %8 = vsyncpa [#allocation3], 0
    %9 = vsyncpa [#allocation6], 0
    %10 = vsyncpa [#allocation4], 0
    // Predicated region
    $region2: #{tpu_custom_call.1} parent=1 // pred_check
      _
    $region3: #{tpu_custom_call.1} parent=1 // pred_check_branch
      %12 = sbr.rel (0) target = $region5
    $region4: #{tpu_custom_call.1} parent=1 // pred_region
      %14 = vsyncadd [#allocation3], 0
      %s16 = sshll.u32 %s0, 4
      %s17 = int_to_ptr.hbm [resolvable:$true] %s16
      %s18 = sshll.u32 [#allocation2], 4
      %s19 = int_to_ptr.vmem [resolvable:$true] %s18
      %21 = dma.hbm_to_vmem [thread:$0]  %s17, 128, %s19, [#allocation3]
    $region5: #{tpu_custom_call.1} parent=1 // pred_fallthru
      _
    // Predicated region
    $region6: #{tpu_custom_call.1} parent=1 // pred_check
      _
    $region7: #{tpu_custom_call.1} parent=1 // pred_check_branch
      %23 = sbr.rel (0) target = $region9
    $region8: #{tpu_custom_call.1} parent=1 // pred_region
      %25 = vsyncadd [#allocation6], 0
      %s26 = sshll.u32 %s1, 4
      %s27 = int_to_ptr.hbm [resolvable:$true] %s26
      %s28 = sshll.u32 [#allocation5], 4
      %s29 = int_to_ptr.vmem [resolvable:$true] %s28
      %34 = dma.hbm_to_vmem [thread:$0]  %s27, 20480, %s29, [#allocation6], 320, 320, 20
    $region9: #{tpu_custom_call.1} parent=1 // pred_fallthru
      _
    // Predicated region
    $region10: #{tpu_custom_call.1} parent=1 // pred_check
      _
    $region11: #{tpu_custom_call.1} parent=1 // pred_check_branch
      %36 = sbr.rel (0) target = $region13
    $region12: #{tpu_custom_call.1} parent=1 // pred_region
      %38 = vsyncadd [#allocation6], 0
      %s40 = sshll.u32 %s2, 4
      %s41 = int_to_ptr.hbm [resolvable:$true] %s40
      %s42 = sshll.u32 [#allocation7], 4
      %s43 = int_to_ptr.vmem [resolvable:$true] %s42
      %45 = dma.hbm_to_vmem [thread:$0]  %s41, 80, %s43, [#allocation6]
    $region13: #{tpu_custom_call.1} parent=1 // pred_fallthru
      _
    // Predicated region
    $region14: #{tpu_custom_call.1} parent=1 // pred_check
      _
    $region15: #{tpu_custom_call.1} parent=1 // pred_check_branch
      %47 = sbr.rel (0) target = $region17
    $region16: #{tpu_custom_call.1} parent=1 // pred_region
      %49 = dma.done [#allocation3], 128
    $region17: #{tpu_custom_call.1} parent=1 // pred_fallthru
      _
    // Predicated region
    $region18: #{tpu_custom_call.1} parent=1 // pred_check
      _
    $region19: #{tpu_custom_call.1} parent=1 // pred_check_branch
      %51 = sbr.rel (0) target = $region21
    $region20: #{tpu_custom_call.1} parent=1 // pred_region
      %53 = dma.done [#allocation6], 20480
    $region21: #{tpu_custom_call.1} parent=1 // pred_fallthru
      _
    // Predicated region
    $region22: #{tpu_custom_call.1} parent=1 // pred_check
      _
    $region23: #{tpu_custom_call.1} parent=1 // pred_check_branch
      %55 = sbr.rel (0) target = $region25
    $region24: #{tpu_custom_call.1} parent=1 // pred_region
      %57 = dma.done [#allocation6], 80
    $region25: #{tpu_custom_call.1} parent=1 // pred_fallthru
      _
    %v58 = vld [vmem:[#allocation2] sm:$0xff]
    %60 = vst [vmem:[#allocation1] ss:$4 sm:$0xff] %v58
    %v61 = vld.sshfl [vmem:[#allocation1] sm:$0xff pattern:$0x73625140]
    %v62 = vld.sshfl [vmem:[#allocation1 + $0x8] sm:$0xff pattern:$0x73625140]
    %v63 = vld.sshfl [vmem:[#allocation1 + $0x10] sm:$0xff pattern:$0x73625140]
    %v64 = vld.sshfl [vmem:[#allocation1 + $0x18] sm:$0xff pattern:$0x73625140]
    %v69 = vpack.c.bf16 %v61, %v61
    %v70 = vpack.c.bf16 %v62, %v62
    %v71 = vpack.c.bf16 %v63, %v63
    %v72 = vpack.c.bf16 %v64, %v64
    %v73 = vld [vmem:[#allocation5] sm:$0xff]
    %v74 = vld [vmem:[#allocation5 + $0x8] sm:$0xff]
    %v75 = vld [vmem:[#allocation5 + $0x10] sm:$0xf]
    %v76 = vld [vmem:[#allocation5 + $0x14] sm:$0xff]
    %v77 = vld [vmem:[#allocation5 + $0x1c] sm:$0xff]
    %v78 = vld [vmem:[#allocation5 + $0x24] sm:$0xf]
    %v79 = vld [vmem:[#allocation5 + $0x28] sm:$0xff]
    %v80 = vld [vmem:[#allocation5 + $0x30] sm:$0xff]
    %v81 = vld [vmem:[#allocation5 + $0x38] sm:$0xf]
    %v82 = vld [vmem:[#allocation5 + $0x3c] sm:$0xff]
    %v83 = vld [vmem:[#allocation5 + $0x44] sm:$0xff]
    %v84 = vld [vmem:[#allocation5 + $0x4c] sm:$0xf]
    %v85 = vld [vmem:[#allocation5 + $0x50] sm:$0xff]
    %v86 = vld [vmem:[#allocation5 + $0x58] sm:$0xff]
    %v87 = vld [vmem:[#allocation5 + $0x60] sm:$0xf]
    %v88 = vld [vmem:[#allocation5 + $0x64] sm:$0xff]
    %v89 = vld [vmem:[#allocation5 + $0x6c] sm:$0xff]
    %v90 = vld [vmem:[#allocation5 + $0x74] sm:$0xf]
    %v91 = vld [vmem:[#allocation5 + $0x78] sm:$0xff]
    %v92 = vld [vmem:[#allocation5 + $0x80] sm:$0xff]
    %v93 = vld [vmem:[#allocation5 + $0x88] sm:$0xf]
    %v94 = vld [vmem:[#allocation5 + $0x8c] sm:$0xff]
    %v95 = vld [vmem:[#allocation5 + $0x94] sm:$0xff]
    %v96 = vld [vmem:[#allocation5 + $0x9c] sm:$0xf]
    %v97 = vld [vmem:[#allocation5 + $0xa0] sm:$0xff]
    %v98 = vld [vmem:[#allocation5 + $0xa8] sm:$0xff]
    %v99 = vld [vmem:[#allocation5 + $0xb0] sm:$0xf]
    %v100 = vld [vmem:[#allocation5 + $0xb4] sm:$0xff]
    %v101 = vld [vmem:[#allocation5 + $0xbc] sm:$0xff]
    %v102 = vld [vmem:[#allocation5 + $0xc4] sm:$0xf]
    %v103 = vld [vmem:[#allocation5 + $0xc8] sm:$0xff]
    %v104 = vld [vmem:[#allocation5 + $0xd0] sm:$0xff]
    %v105 = vld [vmem:[#allocation5 + $0xd8] sm:$0xf]
    %v106 = vld [vmem:[#allocation5 + $0xdc] sm:$0xff]
    %v107 = vld [vmem:[#allocation5 + $0xe4] sm:$0xff]
    %v108 = vld [vmem:[#allocation5 + $0xec] sm:$0xf]
    %v109 = vld [vmem:[#allocation5 + $0xf0] sm:$0xff]
    %v110 = vld [vmem:[#allocation5 + $0xf8] sm:$0xff]
    %v111 = vld [vmem:[#allocation5 + $0x100] sm:$0xf]
    %v112 = vld [vmem:[#allocation5 + $0x104] sm:$0xff]
    %v113 = vld [vmem:[#allocation5 + $0x10c] sm:$0xff]
    %v114 = vld [vmem:[#allocation5 + $0x114] sm:$0xf]
    %v115 = vld [vmem:[#allocation5 + $0x118] sm:$0xff]
    %v116 = vld [vmem:[#allocation5 + $0x120] sm:$0xff]
    %v117 = vld [vmem:[#allocation5 + $0x128] sm:$0xf]
    %v118 = vld [vmem:[#allocation5 + $0x12c] sm:$0xff]
    %v119 = vld [vmem:[#allocation5 + $0x134] sm:$0xff]
    %v120 = vld [vmem:[#allocation5 + $0x13c] sm:$0xf]
    %v121 = vld [vmem:[#allocation5 + $0x140] sm:$0xff]
    %v122 = vld [vmem:[#allocation5 + $0x148] sm:$0xff]
    %v123 = vld [vmem:[#allocation5 + $0x150] sm:$0xf]
    %v124 = vld [vmem:[#allocation5 + $0x154] sm:$0xff]
    %v125 = vld [vmem:[#allocation5 + $0x15c] sm:$0xff]
    %v126 = vld [vmem:[#allocation5 + $0x164] sm:$0xf]
    %v127 = vld [vmem:[#allocation5 + $0x168] sm:$0xff]
    %v128 = vld [vmem:[#allocation5 + $0x170] sm:$0xff]
    %v129 = vld [vmem:[#allocation5 + $0x178] sm:$0xf]
    %v130 = vld [vmem:[#allocation5 + $0x17c] sm:$0xff]
    %v131 = vld [vmem:[#allocation5 + $0x184] sm:$0xff]
    %v132 = vld [vmem:[#allocation5 + $0x18c] sm:$0xf]
    %v133 = vld [vmem:[#allocation5 + $0x190] sm:$0xff]
    %v134 = vld [vmem:[#allocation5 + $0x198] sm:$0xff]
    %v135 = vld [vmem:[#allocation5 + $0x1a0] sm:$0xf]
    %v136 = vld [vmem:[#allocation5 + $0x1a4] sm:$0xff]
    %v137 = vld [vmem:[#allocation5 + $0x1ac] sm:$0xff]
    %v138 = vld [vmem:[#allocation5 + $0x1b4] sm:$0xf]
    %v139 = vld [vmem:[#allocation5 + $0x1b8] sm:$0xff]
    %v140 = vld [vmem:[#allocation5 + $0x1c0] sm:$0xff]
    %v141 = vld [vmem:[#allocation5 + $0x1c8] sm:$0xf]
    %v142 = vld [vmem:[#allocation5 + $0x1cc] sm:$0xff]
    %v143 = vld [vmem:[#allocation5 + $0x1d4] sm:$0xff]
    %v144 = vld [vmem:[#allocation5 + $0x1dc] sm:$0xf]
    %v145 = vld [vmem:[#allocation5 + $0x1e0] sm:$0xff]
    %v146 = vld [vmem:[#allocation5 + $0x1e8] sm:$0xff]
    %v147 = vld [vmem:[#allocation5 + $0x1f0] sm:$0xf]
    %v148 = vld [vmem:[#allocation5 + $0x1f4] sm:$0xff]
    %v149 = vld [vmem:[#allocation5 + $0x1fc] sm:$0xff]
    %v150 = vld [vmem:[#allocation5 + $0x204] sm:$0xf]
    %v151 = vld [vmem:[#allocation5 + $0x208] sm:$0xff]
    %v152 = vld [vmem:[#allocation5 + $0x210] sm:$0xff]
    %v153 = vld [vmem:[#allocation5 + $0x218] sm:$0xf]
    %v154 = vld [vmem:[#allocation5 + $0x21c] sm:$0xff]
    %v155 = vld [vmem:[#allocation5 + $0x224] sm:$0xff]
    %v156 = vld [vmem:[#allocation5 + $0x22c] sm:$0xf]
    %v157 = vld [vmem:[#allocation5 + $0x230] sm:$0xff]
    %v158 = vld [vmem:[#allocation5 + $0x238] sm:$0xff]
    %v159 = vld [vmem:[#allocation5 + $0x240] sm:$0xf]
    %v160 = vld [vmem:[#allocation5 + $0x244] sm:$0xff]
    %v161 = vld [vmem:[#allocation5 + $0x24c] sm:$0xff]
    %v162 = vld [vmem:[#allocation5 + $0x254] sm:$0xf]
    %v163 = vld [vmem:[#allocation5 + $0x258] sm:$0xff]
    %v164 = vld [vmem:[#allocation5 + $0x260] sm:$0xff]
    %v165 = vld [vmem:[#allocation5 + $0x268] sm:$0xf]
    %v166 = vld [vmem:[#allocation5 + $0x26c] sm:$0xff]
    %v167 = vld [vmem:[#allocation5 + $0x274] sm:$0xff]
    %v168 = vld [vmem:[#allocation5 + $0x27c] sm:$0xf]
    %v169 = vld [vmem:[#allocation5 + $0x280] sm:$0xff]
    %v170 = vld [vmem:[#allocation5 + $0x288] sm:$0xff]
    %v171 = vld [vmem:[#allocation5 + $0x290] sm:$0xf]
    %v172 = vld [vmem:[#allocation5 + $0x294] sm:$0xff]
    %v173 = vld [vmem:[#allocation5 + $0x29c] sm:$0xff]
    %v174 = vld [vmem:[#allocation5 + $0x2a4] sm:$0xf]
    %v175 = vld [vmem:[#allocation5 + $0x2a8] sm:$0xff]
    %v176 = vld [vmem:[#allocation5 + $0x2b0] sm:$0xff]
    %v177 = vld [vmem:[#allocation5 + $0x2b8] sm:$0xf]
    %v178 = vld [vmem:[#allocation5 + $0x2bc] sm:$0xff]
    %v179 = vld [vmem:[#allocation5 + $0x2c4] sm:$0xff]
    %v180 = vld [vmem:[#allocation5 + $0x2cc] sm:$0xf]
    %v181 = vld [vmem:[#allocation5 + $0x2d0] sm:$0xff]
    %v182 = vld [vmem:[#allocation5 + $0x2d8] sm:$0xff]
    %v183 = vld [vmem:[#allocation5 + $0x2e0] sm:$0xf]
    %v184 = vld [vmem:[#allocation5 + $0x2e4] sm:$0xff]
    %v185 = vld [vmem:[#allocation5 + $0x2ec] sm:$0xff]
    %v186 = vld [vmem:[#allocation5 + $0x2f4] sm:$0xf]
    %v187 = vld [vmem:[#allocation5 + $0x2f8] sm:$0xff]
    %v188 = vld [vmem:[#allocation5 + $0x300] sm:$0xff]
    %v189 = vld [vmem:[#allocation5 + $0x308] sm:$0xf]
    %v190 = vld [vmem:[#allocation5 + $0x30c] sm:$0xff]
    %v191 = vld [vmem:[#allocation5 + $0x314] sm:$0xff]
    %v192 = vld [vmem:[#allocation5 + $0x31c] sm:$0xf]
    %v193 = vld [vmem:[#allocation5 + $0x320] sm:$0xff]
    %v194 = vld [vmem:[#allocation5 + $0x328] sm:$0xff]
    %v195 = vld [vmem:[#allocation5 + $0x330] sm:$0xf]
    %v196 = vld [vmem:[#allocation5 + $0x334] sm:$0xff]
    %v197 = vld [vmem:[#allocation5 + $0x33c] sm:$0xff]
    %v198 = vld [vmem:[#allocation5 + $0x344] sm:$0xf]
    %v199 = vld [vmem:[#allocation5 + $0x348] sm:$0xff]
    %v200 = vld [vmem:[#allocation5 + $0x350] sm:$0xff]
    %v201 = vld [vmem:[#allocation5 + $0x358] sm:$0xf]
    %v202 = vld [vmem:[#allocation5 + $0x35c] sm:$0xff]
    %v203 = vld [vmem:[#allocation5 + $0x364] sm:$0xff]
    %v204 = vld [vmem:[#allocation5 + $0x36c] sm:$0xf]
    %v205 = vld [vmem:[#allocation5 + $0x370] sm:$0xff]
    %v206 = vld [vmem:[#allocation5 + $0x378] sm:$0xff]
    %v207 = vld [vmem:[#allocation5 + $0x380] sm:$0xf]
    %v208 = vld [vmem:[#allocation5 + $0x384] sm:$0xff]
    %v209 = vld [vmem:[#allocation5 + $0x38c] sm:$0xff]
    %v210 = vld [vmem:[#allocation5 + $0x394] sm:$0xf]
    %v211 = vld [vmem:[#allocation5 + $0x398] sm:$0xff]
    %v212 = vld [vmem:[#allocation5 + $0x3a0] sm:$0xff]
    %v213 = vld [vmem:[#allocation5 + $0x3a8] sm:$0xf]
    %v214 = vld [vmem:[#allocation5 + $0x3ac] sm:$0xff]
    %v215 = vld [vmem:[#allocation5 + $0x3b4] sm:$0xff]
    %v216 = vld [vmem:[#allocation5 + $0x3bc] sm:$0xf]
    %v217 = vld [vmem:[#allocation5 + $0x3c0] sm:$0xff]
    %v218 = vld [vmem:[#allocation5 + $0x3c8] sm:$0xff]
    %v219 = vld [vmem:[#allocation5 + $0x3d0] sm:$0xf]
    %v220 = vld [vmem:[#allocation5 + $0x3d4] sm:$0xff]
    %v221 = vld [vmem:[#allocation5 + $0x3dc] sm:$0xff]
    %v222 = vld [vmem:[#allocation5 + $0x3e4] sm:$0xf]
    %v223 = vld [vmem:[#allocation5 + $0x3e8] sm:$0xff]
    %v224 = vld [vmem:[#allocation5 + $0x3f0] sm:$0xff]
    %v225 = vld [vmem:[#allocation5 + $0x3f8] sm:$0xf]
    %v226 = vld [vmem:[#allocation5 + $0x3fc] sm:$0xff]
    %v227 = vld [vmem:[#allocation5 + $0x404] sm:$0xff]
    %v228 = vld [vmem:[#allocation5 + $0x40c] sm:$0xf]
    %v229 = vld [vmem:[#allocation5 + $0x410] sm:$0xff]
    %v230 = vld [vmem:[#allocation5 + $0x418] sm:$0xff]
    %v231 = vld [vmem:[#allocation5 + $0x420] sm:$0xf]
    %v232 = vld [vmem:[#allocation5 + $0x424] sm:$0xff]
    %v233 = vld [vmem:[#allocation5 + $0x42c] sm:$0xff]
    %v234 = vld [vmem:[#allocation5 + $0x434] sm:$0xf]
    %v235 = vld [vmem:[#allocation5 + $0x438] sm:$0xff]
    %v236 = vld [vmem:[#allocation5 + $0x440] sm:$0xff]
    %v237 = vld [vmem:[#allocation5 + $0x448] sm:$0xf]
    %v238 = vld [vmem:[#allocation5 + $0x44c] sm:$0xff]
    %v239 = vld [vmem:[#allocation5 + $0x454] sm:$0xff]
    %v240 = vld [vmem:[#allocation5 + $0x45c] sm:$0xf]
    %v241 = vld [vmem:[#allocation5 + $0x460] sm:$0xff]
    %v242 = vld [vmem:[#allocation5 + $0x468] sm:$0xff]
    %v243 = vld [vmem:[#allocation5 + $0x470] sm:$0xf]
    %v244 = vld [vmem:[#allocation5 + $0x474] sm:$0xff]
    %v245 = vld [vmem:[#allocation5 + $0x47c] sm:$0xff]
    %v246 = vld [vmem:[#allocation5 + $0x484] sm:$0xf]
    %v247 = vld [vmem:[#allocation5 + $0x488] sm:$0xff]
    %v248 = vld [vmem:[#allocation5 + $0x490] sm:$0xff]
    %v249 = vld [vmem:[#allocation5 + $0x498] sm:$0xf]
    %v250 = vld [vmem:[#allocation5 + $0x49c] sm:$0xff]
    %v251 = vld [vmem:[#allocation5 + $0x4a4] sm:$0xff]
    %v252 = vld [vmem:[#allocation5 + $0x4ac] sm:$0xf]
    %v253 = vld [vmem:[#allocation5 + $0x4b0] sm:$0xff]
    %v254 = vld [vmem:[#allocation5 + $0x4b8] sm:$0xff]
    %v255 = vld [vmem:[#allocation5 + $0x4c0] sm:$0xf]
    %v256 = vld [vmem:[#allocation5 + $0x4c4] sm:$0xff]
    %v257 = vld [vmem:[#allocation5 + $0x4cc] sm:$0xff]
    %v258 = vld [vmem:[#allocation5 + $0x4d4] sm:$0xf]
    %v259 = vld [vmem:[#allocation5 + $0x4d8] sm:$0xff]
    %v260 = vld [vmem:[#allocation5 + $0x4e0] sm:$0xff]
    %v261 = vld [vmem:[#allocation5 + $0x4e8] sm:$0xf]
    %v262 = vld [vmem:[#allocation5 + $0x4ec] sm:$0xff]
    %v263 = vld [vmem:[#allocation5 + $0x4f4] sm:$0xff]
    %v264 = vld [vmem:[#allocation5 + $0x4fc] sm:$0xf]
    %v265 = vld [vmem:[#allocation7] sm:$0x1f]
    %v267 = vperm.slane %v265, 0
    %v268 = vperm.slane %v265, 1
    %v269 = vperm.slane %v265, 2
    %v270 = vperm.slane %v265, 3
    %v271 = vperm.slane %v265, 4
    %v469 = vunpack.c.l.b16 %v73
    %v470 = vunpack.c.h.b16 %v73
    %v471 = vunpack.c.l.b16 %v74
    %v472 = vunpack.c.h.b16 %v74
    %v473 = vunpack.c.l.b16 %v75
    %v474 = vunpack.c.l.b16 %v76
    %v475 = vunpack.c.h.b16 %v76
    %v476 = vunpack.c.l.b16 %v77
    %v477 = vunpack.c.h.b16 %v77
    %v478 = vunpack.c.l.b16 %v78
    %v479 = vunpack.c.l.b16 %v79
    %v480 = vunpack.c.h.b16 %v79
    %v481 = vunpack.c.l.b16 %v80
    %v482 = vunpack.c.h.b16 %v80
    %v483 = vunpack.c.l.b16 %v81
    %v484 = vunpack.c.l.b16 %v82
    %v485 = vunpack.c.h.b16 %v82
    %v486 = vunpack.c.l.b16 %v83
    %v487 = vunpack.c.h.b16 %v83
    %v488 = vunpack.c.l.b16 %v84
    %v489 = vunpack.c.l.b16 %v85
    %v490 = vunpack.c.h.b16 %v85
    %v491 = vunpack.c.l.b16 %v86
    %v492 = vunpack.c.h.b16 %v86
    %v493 = vunpack.c.l.b16 %v87
    %v494 = vunpack.c.l.b16 %v88
    %v495 = vunpack.c.h.b16 %v88
    %v496 = vunpack.c.l.b16 %v89
    %v497 = vunpack.c.h.b16 %v89
    %v498 = vunpack.c.l.b16 %v90
    %v499 = vunpack.c.l.b16 %v91
    %v500 = vunpack.c.h.b16 %v91
    %v501 = vunpack.c.l.b16 %v92
    %v502 = vunpack.c.h.b16 %v92
    %v503 = vunpack.c.l.b16 %v93
    %v504 = vunpack.c.l.b16 %v94
    %v505 = vunpack.c.h.b16 %v94
    %v506 = vunpack.c.l.b16 %v95
    %v507 = vunpack.c.h.b16 %v95
    %v508 = vunpack.c.l.b16 %v96
    %v509 = vunpack.c.l.b16 %v97
    %v510 = vunpack.c.h.b16 %v97
    %v511 = vunpack.c.l.b16 %v98
    %v512 = vunpack.c.h.b16 %v98
    %v513 = vunpack.c.l.b16 %v99
    %v514 = vunpack.c.l.b16 %v100
    %v515 = vunpack.c.h.b16 %v100
    %v516 = vunpack.c.l.b16 %v101
    %v517 = vunpack.c.h.b16 %v101
    %v518 = vunpack.c.l.b16 %v102
    %v519 = vunpack.c.l.b16 %v103
    %v520 = vunpack.c.h.b16 %v103
    %v521 = vunpack.c.l.b16 %v104
    %v522 = vunpack.c.h.b16 %v104
    %v523 = vunpack.c.l.b16 %v105
    %v524 = vunpack.c.l.b16 %v106
    %v525 = vunpack.c.h.b16 %v106
    %v526 = vunpack.c.l.b16 %v107
    %v527 = vunpack.c.h.b16 %v107
    %v528 = vunpack.c.l.b16 %v108
    %v529 = vunpack.c.l.b16 %v109
    %v530 = vunpack.c.h.b16 %v109
    %v531 = vunpack.c.l.b16 %v110
    %v532 = vunpack.c.h.b16 %v110
    %v533 = vunpack.c.l.b16 %v111
    %v534 = vunpack.c.l.b16 %v112
    %v535 = vunpack.c.h.b16 %v112
    %v536 = vunpack.c.l.b16 %v113
    %v537 = vunpack.c.h.b16 %v113
    %v538 = vunpack.c.l.b16 %v114
    %v539 = vunpack.c.l.b16 %v115
    %v540 = vunpack.c.h.b16 %v115
    %v541 = vunpack.c.l.b16 %v116
    %v542 = vunpack.c.h.b16 %v116
    %v543 = vunpack.c.l.b16 %v117
    %v544 = vunpack.c.l.b16 %v118
    %v545 = vunpack.c.h.b16 %v118
    %v546 = vunpack.c.l.b16 %v119
    %v547 = vunpack.c.h.b16 %v119
    %v548 = vunpack.c.l.b16 %v120
    %v549 = vunpack.c.l.b16 %v121
    %v550 = vunpack.c.h.b16 %v121
    %v551 = vunpack.c.l.b16 %v122
    %v552 = vunpack.c.h.b16 %v122
    %v553 = vunpack.c.l.b16 %v123
    %v554 = vunpack.c.l.b16 %v124
    %v555 = vunpack.c.h.b16 %v124
    %v556 = vunpack.c.l.b16 %v125
    %v557 = vunpack.c.h.b16 %v125
    %v558 = vunpack.c.l.b16 %v126
    %v559 = vunpack.c.l.b16 %v127
    %v560 = vunpack.c.h.b16 %v127
    %v561 = vunpack.c.l.b16 %v128
    %v562 = vunpack.c.h.b16 %v128
    %v563 = vunpack.c.l.b16 %v129
    %v564 = vunpack.c.l.b16 %v130
    %v565 = vunpack.c.h.b16 %v130
    %v566 = vunpack.c.l.b16 %v131
    %v567 = vunpack.c.h.b16 %v131
    %v568 = vunpack.c.l.b16 %v132
    %v569 = vunpack.c.l.b16 %v133
    %v570 = vunpack.c.h.b16 %v133
    %v571 = vunpack.c.l.b16 %v134
    %v572 = vunpack.c.h.b16 %v134
    %v573 = vunpack.c.l.b16 %v135
    %v574 = vunpack.c.l.b16 %v136
    %v575 = vunpack.c.h.b16 %v136
    %v576 = vunpack.c.l.b16 %v137
    %v577 = vunpack.c.h.b16 %v137
    %v578 = vunpack.c.l.b16 %v138
    %v579 = vunpack.c.l.b16 %v139
    %v580 = vunpack.c.h.b16 %v139
    %v581 = vunpack.c.l.b16 %v140
    %v582 = vunpack.c.h.b16 %v140
    %v583 = vunpack.c.l.b16 %v141
    %v584 = vunpack.c.l.b16 %v142
    %v585 = vunpack.c.h.b16 %v142
    %v586 = vunpack.c.l.b16 %v143
    %v587 = vunpack.c.h.b16 %v143
    %v588 = vunpack.c.l.b16 %v144
    %v589 = vunpack.c.l.b16 %v145
    %v590 = vunpack.c.h.b16 %v145
    %v591 = vunpack.c.l.b16 %v146
    %v592 = vunpack.c.h.b16 %v146
    %v593 = vunpack.c.l.b16 %v147
    %v594 = vunpack.c.l.b16 %v148
    %v595 = vunpack.c.h.b16 %v148
    %v596 = vunpack.c.l.b16 %v149
    %v597 = vunpack.c.h.b16 %v149
    %v598 = vunpack.c.l.b16 %v150
    %v599 = vunpack.c.l.b16 %v151
    %v600 = vunpack.c.h.b16 %v151
    %v601 = vunpack.c.l.b16 %v152
    %v602 = vunpack.c.h.b16 %v152
    %v603 = vunpack.c.l.b16 %v153
    %v604 = vunpack.c.l.b16 %v154
    %v605 = vunpack.c.h.b16 %v154
    %v606 = vunpack.c.l.b16 %v155
    %v607 = vunpack.c.h.b16 %v155
    %v608 = vunpack.c.l.b16 %v156
    %v609 = vunpack.c.l.b16 %v157
    %v610 = vunpack.c.h.b16 %v157
    %v611 = vunpack.c.l.b16 %v158
    %v612 = vunpack.c.h.b16 %v158
    %v613 = vunpack.c.l.b16 %v159
    %v614 = vunpack.c.l.b16 %v160
    %v615 = vunpack.c.h.b16 %v160
    %v616 = vunpack.c.l.b16 %v161
    %v617 = vunpack.c.h.b16 %v161
    %v618 = vunpack.c.l.b16 %v162
    %v619 = vunpack.c.l.b16 %v163
    %v620 = vunpack.c.h.b16 %v163
    %v621 = vunpack.c.l.b16 %v164
    %v622 = vunpack.c.h.b16 %v164
    %v623 = vunpack.c.l.b16 %v165
    %v624 = vunpack.c.l.b16 %v166
    %v625 = vunpack.c.h.b16 %v166
    %v626 = vunpack.c.l.b16 %v167
    %v627 = vunpack.c.h.b16 %v167
    %v628 = vunpack.c.l.b16 %v168
    %v629 = vunpack.c.l.b16 %v169
    %v630 = vunpack.c.h.b16 %v169
    %v631 = vunpack.c.l.b16 %v170
    %v632 = vunpack.c.h.b16 %v170
    %v633 = vunpack.c.l.b16 %v171
    %v634 = vunpack.c.l.b16 %v172
    %v635 = vunpack.c.h.b16 %v172
    %v636 = vunpack.c.l.b16 %v173
    %v637 = vunpack.c.h.b16 %v173
    %v638 = vunpack.c.l.b16 %v174
    %v639 = vunpack.c.l.b16 %v175
    %v640 = vunpack.c.h.b16 %v175
    %v641 = vunpack.c.l.b16 %v176
    %v642 = vunpack.c.h.b16 %v176
    %v643 = vunpack.c.l.b16 %v177
    %v644 = vunpack.c.l.b16 %v178
    %v645 = vunpack.c.h.b16 %v178
    %v646 = vunpack.c.l.b16 %v179
    %v647 = vunpack.c.h.b16 %v179
    %v648 = vunpack.c.l.b16 %v180
    %v649 = vunpack.c.l.b16 %v181
    %v650 = vunpack.c.h.b16 %v181
    %v651 = vunpack.c.l.b16 %v182
    %v652 = vunpack.c.h.b16 %v182
    %v653 = vunpack.c.l.b16 %v183
    %v654 = vunpack.c.l.b16 %v184
    %v655 = vunpack.c.h.b16 %v184
    %v656 = vunpack.c.l.b16 %v185
    %v657 = vunpack.c.h.b16 %v185
    %v658 = vunpack.c.l.b16 %v186
    %v659 = vunpack.c.l.b16 %v187
    %v660 = vunpack.c.h.b16 %v187
    %v661 = vunpack.c.l.b16 %v188
    %v662 = vunpack.c.h.b16 %v188
    %v663 = vunpack.c.l.b16 %v189
    %v664 = vunpack.c.l.b16 %v190
    %v665 = vunpack.c.h.b16 %v190
    %v666 = vunpack.c.l.b16 %v191
    %v667 = vunpack.c.h.b16 %v191
    %v668 = vunpack.c.l.b16 %v192
    %v669 = vunpack.c.l.b16 %v193
    %v670 = vunpack.c.h.b16 %v193
    %v671 = vunpack.c.l.b16 %v194
    %v672 = vunpack.c.h.b16 %v194
    %v673 = vunpack.c.l.b16 %v195
    %v674 = vunpack.c.l.b16 %v196
    %v675 = vunpack.c.h.b16 %v196
    %v676 = vunpack.c.l.b16 %v197
    %v677 = vunpack.c.h.b16 %v197
    %v678 = vunpack.c.l.b16 %v198
    %v679 = vunpack.c.l.b16 %v199
    %v680 = vunpack.c.h.b16 %v199
    %v681 = vunpack.c.l.b16 %v200
    %v682 = vunpack.c.h.b16 %v200
    %v683 = vunpack.c.l.b16 %v201
    %v684 = vunpack.c.l.b16 %v202
    %v685 = vunpack.c.h.b16 %v202
    %v686 = vunpack.c.l.b16 %v203
    %v687 = vunpack.c.h.b16 %v203
    %v688 = vunpack.c.l.b16 %v204
    %v689 = vunpack.c.l.b16 %v205
    %v690 = vunpack.c.h.b16 %v205
    %v691 = vunpack.c.l.b16 %v206
    %v692 = vunpack.c.h.b16 %v206
    %v693 = vunpack.c.l.b16 %v207
    %v694 = vunpack.c.l.b16 %v208
    %v695 = vunpack.c.h.b16 %v208
    %v696 = vunpack.c.l.b16 %v209
    %v697 = vunpack.c.h.b16 %v209
    %v698 = vunpack.c.l.b16 %v210
    %v699 = vunpack.c.l.b16 %v211
    %v700 = vunpack.c.h.b16 %v211
    %v701 = vunpack.c.l.b16 %v212
    %v702 = vunpack.c.h.b16 %v212
    %v703 = vunpack.c.l.b16 %v213
    %v704 = vunpack.c.l.b16 %v214
    %v705 = vunpack.c.h.b16 %v214
    %v706 = vunpack.c.l.b16 %v215
    %v707 = vunpack.c.h.b16 %v215
    %v708 = vunpack.c.l.b16 %v216
    %v709 = vunpack.c.l.b16 %v217
    %v710 = vunpack.c.h.b16 %v217
    %v711 = vunpack.c.l.b16 %v218
    %v712 = vunpack.c.h.b16 %v218
    %v713 = vunpack.c.l.b16 %v219
    %v714 = vunpack.c.l.b16 %v220
    %v715 = vunpack.c.h.b16 %v220
    %v716 = vunpack.c.l.b16 %v221
    %v717 = vunpack.c.h.b16 %v221
    %v718 = vunpack.c.l.b16 %v222
    %v719 = vunpack.c.l.b16 %v223
    %v720 = vunpack.c.h.b16 %v223
    %v721 = vunpack.c.l.b16 %v224
    %v722 = vunpack.c.h.b16 %v224
    %v723 = vunpack.c.l.b16 %v225
    %v724 = vunpack.c.l.b16 %v226
    %v725 = vunpack.c.h.b16 %v226
    %v726 = vunpack.c.l.b16 %v227
    %v727 = vunpack.c.h.b16 %v227
    %v728 = vunpack.c.l.b16 %v228
    %v729 = vunpack.c.l.b16 %v229
    %v730 = vunpack.c.h.b16 %v229
    %v731 = vunpack.c.l.b16 %v230
    %v732 = vunpack.c.h.b16 %v230
    %v733 = vunpack.c.l.b16 %v231
    %v734 = vunpack.c.l.b16 %v232
    %v735 = vunpack.c.h.b16 %v232
    %v736 = vunpack.c.l.b16 %v233
    %v737 = vunpack.c.h.b16 %v233
    %v738 = vunpack.c.l.b16 %v234
    %v739 = vunpack.c.l.b16 %v235
    %v740 = vunpack.c.h.b16 %v235
    %v741 = vunpack.c.l.b16 %v236
    %v742 = vunpack.c.h.b16 %v236
    %v743 = vunpack.c.l.b16 %v237
    %v744 = vunpack.c.l.b16 %v238
    %v745 = vunpack.c.h.b16 %v238
    %v746 = vunpack.c.l.b16 %v239
    %v747 = vunpack.c.h.b16 %v239
    %v748 = vunpack.c.l.b16 %v240
    %v749 = vunpack.c.l.b16 %v241
    %v750 = vunpack.c.h.b16 %v241
    %v751 = vunpack.c.l.b16 %v242
    %v752 = vunpack.c.h.b16 %v242
    %v753 = vunpack.c.l.b16 %v243
    %v754 = vunpack.c.l.b16 %v244
    %v755 = vunpack.c.h.b16 %v244
    %v756 = vunpack.c.l.b16 %v245
    %v757 = vunpack.c.h.b16 %v245
    %v758 = vunpack.c.l.b16 %v246
    %v759 = vunpack.c.l.b16 %v247
    %v760 = vunpack.c.h.b16 %v247
    %v761 = vunpack.c.l.b16 %v248
    %v762 = vunpack.c.h.b16 %v248
    %v763 = vunpack.c.l.b16 %v249
    %v764 = vunpack.c.l.b16 %v250
    %v765 = vunpack.c.h.b16 %v250
    %v766 = vunpack.c.l.b16 %v251
    %v767 = vunpack.c.h.b16 %v251
    %v768 = vunpack.c.l.b16 %v252
    %v769 = vunpack.c.l.b16 %v253
    %v770 = vunpack.c.h.b16 %v253
    %v771 = vunpack.c.l.b16 %v254
    %v772 = vunpack.c.h.b16 %v254
    %v773 = vunpack.c.l.b16 %v255
    %v774 = vunpack.c.l.b16 %v256
    %v775 = vunpack.c.h.b16 %v256
    %v776 = vunpack.c.l.b16 %v257
    %v777 = vunpack.c.h.b16 %v257
    %v778 = vunpack.c.l.b16 %v258
    %v779 = vunpack.c.l.b16 %v259
    %v780 = vunpack.c.h.b16 %v259
    %v781 = vunpack.c.l.b16 %v260
    %v782 = vunpack.c.h.b16 %v260
    %v783 = vunpack.c.l.b16 %v261
    %v784 = vunpack.c.l.b16 %v262
    %v785 = vunpack.c.h.b16 %v262
    %v786 = vunpack.c.l.b16 %v263
    %v787 = vunpack.c.h.b16 %v263
    %v788 = vunpack.c.l.b16 %v264
    %v789 = vpack.c.b16 %v474, %v469
    %v790 = vpack.c.b16 %v475, %v470
    %v791 = vpack.c.b16 %v476, %v471
    %v792 = vpack.c.b16 %v477, %v472
    %v793 = vpack.c.b16 %v478, %v473
    %v794 = vpack.c.b16 %v484, %v479
    %v795 = vpack.c.b16 %v485, %v480
    %v796 = vpack.c.b16 %v486, %v481
    %v797 = vpack.c.b16 %v487, %v482
    %v798 = vpack.c.b16 %v488, %v483
    %v799 = vpack.c.b16 %v494, %v489
    %v800 = vpack.c.b16 %v495, %v490
    %v801 = vpack.c.b16 %v496, %v491
    %v802 = vpack.c.b16 %v497, %v492
    %v803 = vpack.c.b16 %v498, %v493
    %v804 = vpack.c.b16 %v504, %v499
    %v805 = vpack.c.b16 %v505, %v500
    %v806 = vpack.c.b16 %v506, %v501
    %v807 = vpack.c.b16 %v507, %v502
    %v808 = vpack.c.b16 %v508, %v503
    %v809 = vpack.c.b16 %v514, %v509
    %v810 = vpack.c.b16 %v515, %v510
    %v811 = vpack.c.b16 %v516, %v511
    %v812 = vpack.c.b16 %v517, %v512
    %v813 = vpack.c.b16 %v518, %v513
    %v814 = vpack.c.b16 %v524, %v519
    %v815 = vpack.c.b16 %v525, %v520
    %v816 = vpack.c.b16 %v526, %v521
    %v817 = vpack.c.b16 %v527, %v522
    %v818 = vpack.c.b16 %v528, %v523
    %v819 = vpack.c.b16 %v534, %v529
    %v820 = vpack.c.b16 %v535, %v530
    %v821 = vpack.c.b16 %v536, %v531
    %v822 = vpack.c.b16 %v537, %v532
    %v823 = vpack.c.b16 %v538, %v533
    %v824 = vpack.c.b16 %v544, %v539
    %v825 = vpack.c.b16 %v545, %v540
    %v826 = vpack.c.b16 %v546, %v541
    %v827 = vpack.c.b16 %v547, %v542
    %v828 = vpack.c.b16 %v548, %v543
    %v829 = vpack.c.b16 %v554, %v549
    %v830 = vpack.c.b16 %v555, %v550
    %v831 = vpack.c.b16 %v556, %v551
    %v832 = vpack.c.b16 %v557, %v552
    %v833 = vpack.c.b16 %v558, %v553
    %v834 = vpack.c.b16 %v564, %v559
    %v835 = vpack.c.b16 %v565, %v560
    %v836 = vpack.c.b16 %v566, %v561
    %v837 = vpack.c.b16 %v567, %v562
    %v838 = vpack.c.b16 %v568, %v563
    %v839 = vpack.c.b16 %v574, %v569
    %v840 = vpack.c.b16 %v575, %v570
    %v841 = vpack.c.b16 %v576, %v571
    %v842 = vpack.c.b16 %v577, %v572
    %v843 = vpack.c.b16 %v578, %v573
    %v844 = vpack.c.b16 %v584, %v579
    %v845 = vpack.c.b16 %v585, %v580
    %v846 = vpack.c.b16 %v586, %v581
    %v847 = vpack.c.b16 %v587, %v582
    %v848 = vpack.c.b16 %v588, %v583
    %v849 = vpack.c.b16 %v594, %v589
    %v850 = vpack.c.b16 %v595, %v590
    %v851 = vpack.c.b16 %v596, %v591
    %v852 = vpack.c.b16 %v597, %v592
    %v853 = vpack.c.b16 %v598, %v593
    %v854 = vpack.c.b16 %v604, %v599
    %v855 = vpack.c.b16 %v605, %v600
    %v856 = vpack.c.b16 %v606, %v601
    %v857 = vpack.c.b16 %v607, %v602
    %v858 = vpack.c.b16 %v608, %v603
    %v859 = vpack.c.b16 %v614, %v609
    %v860 = vpack.c.b16 %v615, %v610
    %v861 = vpack.c.b16 %v616, %v611
    %v862 = vpack.c.b16 %v617, %v612
    %v863 = vpack.c.b16 %v618, %v613
    %v864 = vpack.c.b16 %v624, %v619
    %v865 = vpack.c.b16 %v625, %v620
    %v866 = vpack.c.b16 %v626, %v621
    %v867 = vpack.c.b16 %v627, %v622
    %v868 = vpack.c.b16 %v628, %v623
    %v869 = vpack.c.b16 %v634, %v629
    %v870 = vpack.c.b16 %v635, %v630
    %v871 = vpack.c.b16 %v636, %v631
    %v872 = vpack.c.b16 %v637, %v632
    %v873 = vpack.c.b16 %v638, %v633
    %v874 = vpack.c.b16 %v644, %v639
    %v875 = vpack.c.b16 %v645, %v640
    %v876 = vpack.c.b16 %v646, %v641
    %v877 = vpack.c.b16 %v647, %v642
    %v878 = vpack.c.b16 %v648, %v643
    %v879 = vpack.c.b16 %v654, %v649
    %v880 = vpack.c.b16 %v655, %v650
    %v881 = vpack.c.b16 %v656, %v651
    %v882 = vpack.c.b16 %v657, %v652
    %v883 = vpack.c.b16 %v658, %v653
    %v884 = vpack.c.b16 %v664, %v659
    %v885 = vpack.c.b16 %v665, %v660
    %v886 = vpack.c.b16 %v666, %v661
    %v887 = vpack.c.b16 %v667, %v662
    %v888 = vpack.c.b16 %v668, %v663
    %v889 = vpack.c.b16 %v674, %v669
    %v890 = vpack.c.b16 %v675, %v670
    %v891 = vpack.c.b16 %v676, %v671
    %v892 = vpack.c.b16 %v677, %v672
    %v893 = vpack.c.b16 %v678, %v673
    %v894 = vpack.c.b16 %v684, %v679
    %v895 = vpack.c.b16 %v685, %v680
    %v896 = vpack.c.b16 %v686, %v681
    %v897 = vpack.c.b16 %v687, %v682
    %v898 = vpack.c.b16 %v688, %v683
    %v899 = vpack.c.b16 %v694, %v689
    %v900 = vpack.c.b16 %v695, %v690
    %v901 = vpack.c.b16 %v696, %v691
    %v902 = vpack.c.b16 %v697, %v692
    %v903 = vpack.c.b16 %v698, %v693
    %v904 = vpack.c.b16 %v704, %v699
    %v905 = vpack.c.b16 %v705, %v700
    %v906 = vpack.c.b16 %v706, %v701
    %v907 = vpack.c.b16 %v707, %v702
    %v908 = vpack.c.b16 %v708, %v703
    %v909 = vpack.c.b16 %v714, %v709
    %v910 = vpack.c.b16 %v715, %v710
    %v911 = vpack.c.b16 %v716, %v711
    %v912 = vpack.c.b16 %v717, %v712
    %v913 = vpack.c.b16 %v718, %v713
    %v914 = vpack.c.b16 %v724, %v719
    %v915 = vpack.c.b16 %v725, %v720
    %v916 = vpack.c.b16 %v726, %v721
    %v917 = vpack.c.b16 %v727, %v722
    %v918 = vpack.c.b16 %v728, %v723
    %v919 = vpack.c.b16 %v734, %v729
    %v920 = vpack.c.b16 %v735, %v730
    %v921 = vpack.c.b16 %v736, %v731
    %v922 = vpack.c.b16 %v737, %v732
    %v923 = vpack.c.b16 %v738, %v733
    %v924 = vpack.c.b16 %v744, %v739
    %v925 = vpack.c.b16 %v745, %v740
    %v926 = vpack.c.b16 %v746, %v741
    %v927 = vpack.c.b16 %v747, %v742
    %v928 = vpack.c.b16 %v748, %v743
    %v929 = vpack.c.b16 %v754, %v749
    %v930 = vpack.c.b16 %v755, %v750
    %v931 = vpack.c.b16 %v756, %v751
    %v932 = vpack.c.b16 %v757, %v752
    %v933 = vpack.c.b16 %v758, %v753
    %v934 = vpack.c.b16 %v764, %v759
    %v935 = vpack.c.b16 %v765, %v760
    %v936 = vpack.c.b16 %v766, %v761
    %v937 = vpack.c.b16 %v767, %v762
    %v938 = vpack.c.b16 %v768, %v763
    %v939 = vpack.c.b16 %v774, %v769
    %v940 = vpack.c.b16 %v775, %v770
    %v941 = vpack.c.b16 %v776, %v771
    %v942 = vpack.c.b16 %v777, %v772
    %v943 = vpack.c.b16 %v778, %v773
    %v944 = vpack.c.b16 %v784, %v779
    %v945 = vpack.c.b16 %v785, %v780
    %v946 = vpack.c.b16 %v786, %v781
    %v947 = vpack.c.b16 %v787, %v782
    %v948 = vpack.c.b16 %v788, %v783
    %1109 = vmatpush.bf16.msra.mxu0 %v824
    %1110 = vmatpush.bf16.msra.mxu0 %v819
    %1111 = vmatpush.bf16.msra.mxu0 %v814
    %1112 = vmatpush.bf16.msra.mxu0 %v809
    %1113 = vmatpush.bf16.msra.mxu0 %v804
    %1114 = vmatpush.bf16.msra.mxu0 %v799
    %1115 = vmatpush.bf16.msra.mxu0 %v794
    %1116 = vmatpush.bf16.msra.mxu0 %v789
    %1117 = vmatmul.bf16.gmra.mxu0 %v69
    %v1118 = vpop.f32.mrf.mxu0
    %v1119 = vadd.f32 %v267, %v1118
    %v1120 = vpop.f32.mrf.mxu0
    %1121 = vdwg.mxu0
    %1122 = vmatpush.bf16.msra.mxu0 %v864
    %1123 = vmatpush.bf16.msra.mxu0 %v859
    %1124 = vmatpush.bf16.msra.mxu0 %v854
    %1125 = vmatpush.bf16.msra.mxu0 %v849
    %1126 = vmatpush.bf16.msra.mxu0 %v844
    %1127 = vmatpush.bf16.msra.mxu0 %v839
    %1128 = vmatpush.bf16.msra.mxu0 %v834
    %1129 = vmatpush.bf16.msra.mxu0 %v829
    %1130 = vmatmul.bf16.gmra.mxu0 %v70
    %v1131 = vpop.f32.mrf.mxu0
    %v1132 = vadd.f32 %v1119, %v1131
    %v1133 = vpop.f32.mrf.mxu0
    %1134 = vdwg.mxu0
    %1135 = vmatpush.bf16.msra.mxu0 %v904
    %1136 = vmatpush.bf16.msra.mxu0 %v899
    %1137 = vmatpush.bf16.msra.mxu0 %v894
    %1138 = vmatpush.bf16.msra.mxu0 %v889
    %1139 = vmatpush.bf16.msra.mxu0 %v884
    %1140 = vmatpush.bf16.msra.mxu0 %v879
    %1141 = vmatpush.bf16.msra.mxu0 %v874
    %1142 = vmatpush.bf16.msra.mxu0 %v869
    %1143 = vmatmul.bf16.gmra.mxu0 %v71
    %v1144 = vpop.f32.mrf.mxu0
    %v1145 = vadd.f32 %v1132, %v1144
    %v1146 = vpop.f32.mrf.mxu0
    %1147 = vdwg.mxu0
    %1148 = vmatpush.bf16.msra.mxu0 %v944
    %1149 = vmatpush.bf16.msra.mxu0 %v939
    %1150 = vmatpush.bf16.msra.mxu0 %v934
    %1151 = vmatpush.bf16.msra.mxu0 %v929
    %1152 = vmatpush.bf16.msra.mxu0 %v924
    %1153 = vmatpush.bf16.msra.mxu0 %v919
    %1154 = vmatpush.bf16.msra.mxu0 %v914
    %1155 = vmatpush.bf16.msra.mxu0 %v909
    %1156 = vmatmul.bf16.gmra.mxu0 %v72
    %v1157 = vpop.f32.mrf.mxu0
    %v1158 = vadd.f32 %v1145, %v1157
    %v1159 = vpop.f32.mrf.mxu0
    %1160 = vdwg.mxu0
    %1161 = vmatpush.bf16.msra.mxu0 %v825
    %1162 = vmatpush.bf16.msra.mxu0 %v820
    %1163 = vmatpush.bf16.msra.mxu0 %v815
    %1164 = vmatpush.bf16.msra.mxu0 %v810
    %1165 = vmatpush.bf16.msra.mxu0 %v805
    %1166 = vmatpush.bf16.msra.mxu0 %v800
    %1167 = vmatpush.bf16.msra.mxu0 %v795
    %1168 = vmatpush.bf16.msra.mxu0 %v790
    %1169 = vmatmul.bf16.gmra.mxu0 %v69
    %v1170 = vpop.f32.mrf.mxu0
    %v1171 = vadd.f32 %v268, %v1170
    %v1172 = vpop.f32.mrf.mxu0
    %1173 = vdwg.mxu0
    %1174 = vmatpush.bf16.msra.mxu0 %v865
    %1175 = vmatpush.bf16.msra.mxu0 %v860
    %1176 = vmatpush.bf16.msra.mxu0 %v855
    %1177 = vmatpush.bf16.msra.mxu0 %v850
    %1178 = vmatpush.bf16.msra.mxu0 %v845
    %1179 = vmatpush.bf16.msra.mxu0 %v840
    %1180 = vmatpush.bf16.msra.mxu0 %v835
    %1181 = vmatpush.bf16.msra.mxu0 %v830
    %1182 = vmatmul.bf16.gmra.mxu0 %v70
    %v1183 = vpop.f32.mrf.mxu0
    %v1184 = vadd.f32 %v1171, %v1183
    %v1185 = vpop.f32.mrf.mxu0
    %1186 = vdwg.mxu0
    %1187 = vmatpush.bf16.msra.mxu0 %v905
    %1188 = vmatpush.bf16.msra.mxu0 %v900
    %1189 = vmatpush.bf16.msra.mxu0 %v895
    %1190 = vmatpush.bf16.msra.mxu0 %v890
    %1191 = vmatpush.bf16.msra.mxu0 %v885
    %1192 = vmatpush.bf16.msra.mxu0 %v880
    %1193 = vmatpush.bf16.msra.mxu0 %v875
    %1194 = vmatpush.bf16.msra.mxu0 %v870
    %1195 = vmatmul.bf16.gmra.mxu0 %v71
    %v1196 = vpop.f32.mrf.mxu0
    %v1197 = vadd.f32 %v1184, %v1196
    %v1198 = vpop.f32.mrf.mxu0
    %1199 = vdwg.mxu0
    %1200 = vmatpush.bf16.msra.mxu0 %v945
    %1201 = vmatpush.bf16.msra.mxu0 %v940
    %1202 = vmatpush.bf16.msra.mxu0 %v935
    %1203 = vmatpush.bf16.msra.mxu0 %v930
    %1204 = vmatpush.bf16.msra.mxu0 %v925
    %1205 = vmatpush.bf16.msra.mxu0 %v920
    %1206 = vmatpush.bf16.msra.mxu0 %v915
    %1207 = vmatpush.bf16.msra.mxu0 %v910
    %1208 = vmatmul.bf16.gmra.mxu0 %v72
    %v1209 = vpop.f32.mrf.mxu0
    %v1210 = vadd.f32 %v1197, %v1209
    %v1211 = vpop.f32.mrf.mxu0
    %1212 = vdwg.mxu0
    %1213 = vmatpush.bf16.msra.mxu0 %v826
    %1214 = vmatpush.bf16.msra.mxu0 %v821
    %1215 = vmatpush.bf16.msra.mxu0 %v816
    %1216 = vmatpush.bf16.msra.mxu0 %v811
    %1217 = vmatpush.bf16.msra.mxu0 %v806
    %1218 = vmatpush.bf16.msra.mxu0 %v801
    %1219 = vmatpush.bf16.msra.mxu0 %v796
    %1220 = vmatpush.bf16.msra.mxu0 %v791
    %1221 = vmatmul.bf16.gmra.mxu0 %v69
    %v1222 = vpop.f32.mrf.mxu0
    %v1223 = vadd.f32 %v269, %v1222
    %v1224 = vpop.f32.mrf.mxu0
    %1225 = vdwg.mxu0
    %1226 = vmatpush.bf16.msra.mxu0 %v866
    %1227 = vmatpush.bf16.msra.mxu0 %v861
    %1228 = vmatpush.bf16.msra.mxu0 %v856
    %1229 = vmatpush.bf16.msra.mxu0 %v851
    %1230 = vmatpush.bf16.msra.mxu0 %v846
    %1231 = vmatpush.bf16.msra.mxu0 %v841
    %1232 = vmatpush.bf16.msra.mxu0 %v836
    %1233 = vmatpush.bf16.msra.mxu0 %v831
    %1234 = vmatmul.bf16.gmra.mxu0 %v70
    %v1235 = vpop.f32.mrf.mxu0
    %v1236 = vadd.f32 %v1223, %v1235
    %v1237 = vpop.f32.mrf.mxu0
    %1238 = vdwg.mxu0
    %1239 = vmatpush.bf16.msra.mxu0 %v906
    %1240 = vmatpush.bf16.msra.mxu0 %v901
    %1241 = vmatpush.bf16.msra.mxu0 %v896
    %1242 = vmatpush.bf16.msra.mxu0 %v891
    %1243 = vmatpush.bf16.msra.mxu0 %v886
    %1244 = vmatpush.bf16.msra.mxu0 %v881
    %1245 = vmatpush.bf16.msra.mxu0 %v876
    %1246 = vmatpush.bf16.msra.mxu0 %v871
    %1247 = vmatmul.bf16.gmra.mxu0 %v71
    %v1248 = vpop.f32.mrf.mxu0
    %v1249 = vadd.f32 %v1236, %v1248
    %v1250 = vpop.f32.mrf.mxu0
    %1251 = vdwg.mxu0
    %1252 = vmatpush.bf16.msra.mxu0 %v946
    %1253 = vmatpush.bf16.msra.mxu0 %v941
    %1254 = vmatpush.bf16.msra.mxu0 %v936
    %1255 = vmatpush.bf16.msra.mxu0 %v931
    %1256 = vmatpush.bf16.msra.mxu0 %v926
    %1257 = vmatpush.bf16.msra.mxu0 %v921
    %1258 = vmatpush.bf16.msra.mxu0 %v916
    %1259 = vmatpush.bf16.msra.mxu0 %v911
    %1260 = vmatmul.bf16.gmra.mxu0 %v72
    %v1261 = vpop.f32.mrf.mxu0
    %v1262 = vadd.f32 %v1249, %v1261
    %v1263 = vpop.f32.mrf.mxu0
    %1264 = vdwg.mxu0
    %1265 = vmatpush.bf16.msra.mxu0 %v827
    %1266 = vmatpush.bf16.msra.mxu0 %v822
    %1267 = vmatpush.bf16.msra.mxu0 %v817
    %1268 = vmatpush.bf16.msra.mxu0 %v812
    %1269 = vmatpush.bf16.msra.mxu0 %v807
    %1270 = vmatpush.bf16.msra.mxu0 %v802
    %1271 = vmatpush.bf16.msra.mxu0 %v797
    %1272 = vmatpush.bf16.msra.mxu0 %v792
    %1273 = vmatmul.bf16.gmra.mxu0 %v69
    %v1274 = vpop.f32.mrf.mxu0
    %v1275 = vadd.f32 %v270, %v1274
    %v1276 = vpop.f32.mrf.mxu0
    %1277 = vdwg.mxu0
    %1278 = vmatpush.bf16.msra.mxu0 %v867
    %1279 = vmatpush.bf16.msra.mxu0 %v862
    %1280 = vmatpush.bf16.msra.mxu0 %v857
    %1281 = vmatpush.bf16.msra.mxu0 %v852
    %1282 = vmatpush.bf16.msra.mxu0 %v847
    %1283 = vmatpush.bf16.msra.mxu0 %v842
    %1284 = vmatpush.bf16.msra.mxu0 %v837
    %1285 = vmatpush.bf16.msra.mxu0 %v832
    %1286 = vmatmul.bf16.gmra.mxu0 %v70
    %v1287 = vpop.f32.mrf.mxu0
    %v1288 = vadd.f32 %v1275, %v1287
    %v1289 = vpop.f32.mrf.mxu0
    %1290 = vdwg.mxu0
    %1291 = vmatpush.bf16.msra.mxu0 %v907
    %1292 = vmatpush.bf16.msra.mxu0 %v902
    %1293 = vmatpush.bf16.msra.mxu0 %v897
    %1294 = vmatpush.bf16.msra.mxu0 %v892
    %1295 = vmatpush.bf16.msra.mxu0 %v887
    %1296 = vmatpush.bf16.msra.mxu0 %v882
    %1297 = vmatpush.bf16.msra.mxu0 %v877
    %1298 = vmatpush.bf16.msra.mxu0 %v872
    %1299 = vmatmul.bf16.gmra.mxu0 %v71
    %v1300 = vpop.f32.mrf.mxu0
    %v1301 = vadd.f32 %v1288, %v1300
    %v1302 = vpop.f32.mrf.mxu0
    %1303 = vdwg.mxu0
    %1304 = vmatpush.bf16.msra.mxu0 %v947
    %1305 = vmatpush.bf16.msra.mxu0 %v942
    %1306 = vmatpush.bf16.msra.mxu0 %v937
    %1307 = vmatpush.bf16.msra.mxu0 %v932
    %1308 = vmatpush.bf16.msra.mxu0 %v927
    %1309 = vmatpush.bf16.msra.mxu0 %v922
    %1310 = vmatpush.bf16.msra.mxu0 %v917
    %1311 = vmatpush.bf16.msra.mxu0 %v912
    %1312 = vmatmul.bf16.gmra.mxu0 %v72
    %v1313 = vpop.f32.mrf.mxu0
    %v1314 = vadd.f32 %v1301, %v1313
    %v1315 = vpop.f32.mrf.mxu0
    %1316 = vdwg.mxu0
    %1317 = vmatpush.bf16.msra.mxu0 %v828
    %1318 = vmatpush.bf16.msra.mxu0 %v823
    %1319 = vmatpush.bf16.msra.mxu0 %v818
    %1320 = vmatpush.bf16.msra.mxu0 %v813
    %1321 = vmatpush.bf16.msra.mxu0 %v808
    %1322 = vmatpush.bf16.msra.mxu0 %v803
    %1323 = vmatpush.bf16.msra.mxu0 %v798
    %1324 = vmatpush.bf16.msra.mxu0 %v793
    %1325 = vmatmul.bf16.gmra.mxu0 %v69
    %v1326 = vpop.f32.mrf.mxu0
    %v1327 = vadd.f32 %v271, %v1326
    %v1328 = vpop.f32.mrf.mxu0
    %1329 = vdwg.mxu0
    %1330 = vmatpush.bf16.msra.mxu0 %v868
    %1331 = vmatpush.bf16.msra.mxu0 %v863
    %1332 = vmatpush.bf16.msra.mxu0 %v858
    %1333 = vmatpush.bf16.msra.mxu0 %v853
    %1334 = vmatpush.bf16.msra.mxu0 %v848
    %1335 = vmatpush.bf16.msra.mxu0 %v843
    %1336 = vmatpush.bf16.msra.mxu0 %v838
    %1337 = vmatpush.bf16.msra.mxu0 %v833
    %1338 = vmatmul.bf16.gmra.mxu0 %v70
    %v1339 = vpop.f32.mrf.mxu0
    %v1340 = vadd.f32 %v1327, %v1339
    %v1341 = vpop.f32.mrf.mxu0
    %1342 = vdwg.mxu0
    %1343 = vmatpush.bf16.msra.mxu0 %v908
    %1344 = vmatpush.bf16.msra.mxu0 %v903
    %1345 = vmatpush.bf16.msra.mxu0 %v898
    %1346 = vmatpush.bf16.msra.mxu0 %v893
    %1347 = vmatpush.bf16.msra.mxu0 %v888
    %1348 = vmatpush.bf16.msra.mxu0 %v883
    %1349 = vmatpush.bf16.msra.mxu0 %v878
    %1350 = vmatpush.bf16.msra.mxu0 %v873
    %1351 = vmatmul.bf16.gmra.mxu0 %v71
    %v1352 = vpop.f32.mrf.mxu0
    %v1353 = vadd.f32 %v1340, %v1352
    %v1354 = vpop.f32.mrf.mxu0
    %1355 = vdwg.mxu0
    %1356 = vmatpush.bf16.msra.mxu0 %v948
    %1357 = vmatpush.bf16.msra.mxu0 %v943
    %1358 = vmatpush.bf16.msra.mxu0 %v938
    %1359 = vmatpush.bf16.msra.mxu0 %v933
    %1360 = vmatpush.bf16.msra.mxu0 %v928
    %1361 = vmatpush.bf16.msra.mxu0 %v923
    %1362 = vmatpush.bf16.msra.mxu0 %v918
    %1363 = vmatpush.bf16.msra.mxu0 %v913
    %1364 = vmatmul.bf16.gmra.mxu0 %v72
    %v1365 = vpop.f32.mrf.mxu0
    %v1366 = vadd.f32 %v1353, %v1365
    %v1367 = vpop.f32.mrf.mxu0
    %1368 = vdwg.mxu0
    %v1369 = vmax.f32 %v1158, %v1210
    %v1370 = vmax.f32 %v1369, %v1262
    %v1371 = vmax.f32 %v1370, %v1314
    %v1372 = vmax.f32 %v1371, %v1366
    %v1373 = vmul.f32 %v1372, %v1372
    %vm1374 = vcmask 1041408
    %v1375 = vsel %vm1374, %v1373, 0.0
    %1376 = vadd.xlane.f32.xlu0 %v1375
    %v1377 = vpop.xlane.xlu0 %1376
    %v1378 = vmax.f32 %v1377, 1e-24
    %v1379 = vrsqrt.pop %v1378
    %v1380 = vmul.f32 %v1379, %v1378
    %v1381 = vmul.f32 %v1380, %v1379
    %v1382 = vmul.f32 0.5, %v1381
    %v1383 = vsub.f32 1.5, %v1382
    %v1384 = vmul.f32 %v1379, %v1383
    %vm1385 = vweird.f32 %v1378
    %vm1386 = vweird.f32 %v1379
    %vm1387 = vmor %vm1385, %vm1386
    %v1388 = vsel %vm1387, %v1379, %v1384
    %v1389 = vmul.f32 %v1372, %v1388
    %1390 = vst [vmem:[#allocation8] sm:$0x3] %v1389
    // Predicated region
    $region26: #{tpu_custom_call.1} parent=1 // pred_check
      _
    $region27: #{tpu_custom_call.1} parent=1 // pred_check_branch
      %1392 = sbr.rel (0) target = $region29
    $region28: #{tpu_custom_call.1} parent=1 // pred_region
      %1394 = vsyncadd [#allocation4], 0
      %s1396 = sshll.u32 [#allocation8], 4
      %s1397 = int_to_ptr.vmem [resolvable:$true] %s1396
      %s1398 = sshll.u32 %s3, 4
      %s1399 = int_to_ptr.hbm [resolvable:$true] %s1398
      %1401 = dma.vmem_to_hbm [thread:$0]  %s1397, 32, %s1399, [#allocation4]
    $region29: #{tpu_custom_call.1} parent=1 // pred_fallthru
      _
    // Predicated region
    $region30: #{tpu_custom_call.1} parent=1 // pred_check
      _
    $region31: #{tpu_custom_call.1} parent=1 // pred_check_branch
      %1403 = sbr.rel (0) target = $region33
    $region32: #{tpu_custom_call.1} parent=1 // pred_region
      %1405 = dma.done [#allocation4], 32
    $region33: #{tpu_custom_call.1} parent=1 // pred_fallthru
      _
    %1406 = vsyncpa [#allocation3], 1
    %1407 = vsyncpa [#allocation6], 1
    %1408 = vsyncpa [#allocation4], 1

</llo_original>
